<compile_context>
chip_gen: v6e
topology: v6e:2x2x1
jax: 0.10.0
libtpu: 0.0.40
codegen_flags: <defaults>
</compile_context>

<pallas_src>
import functools

import jax
import jax.numpy as jnp
from jax.experimental import pallas as pl
from jax.experimental.pallas import tpu as pltpu


_VMEM_LIMIT = 48 * 1024 * 1024  # < v7x 64 MiB physical, >> default scoped VMEM


# ------------------------------ tile helpers -------------------------------

def _pick_tile(dim, pref, align):
    """Full dim if small; otherwise an `align`-multiple tile (ragged edge OK for M/N)."""
    if dim <= pref:
        return dim
    return max(align, (pref // align) * align)


def _pick_ktile(K, pref, align=128):
    """K tile must divide K exactly (accumulation axis); else use whole K."""
    if K <= pref:
        return K
    t = (pref // align) * align
    while t >= align:
        if K % t == 0:
            return t
        t -= align
    return K


# ----------------------------- Pallas kernels ------------------------------

def _fused_matmul_kernel(*refs, ln, residual, activation, eps, nk, use_acc):
    """y = act((LN(x)|x) @ w + bias) [+ residual]; fp32 accumulation."""
    it = iter(refs)
    x_ref = next(it)
    if ln:
        g_ref = next(it)
        bta_ref = next(it)
    w_ref = next(it)
    b_ref = next(it)
    r_ref = next(it) if residual else None
    o_ref = next(it)
    acc_ref = next(it) if use_acc else None

    x = x_ref[...].astype(jnp.float32)
    if ln:
        mean = jnp.mean(x, axis=-1, keepdims=True)
        xc = x - mean
        var = jnp.mean(xc * xc, axis=-1, keepdims=True)
        x = xc * jax.lax.rsqrt(var + eps) * g_ref[...] + bta_ref[...]

    part = jnp.dot(x, w_ref[...].astype(jnp.float32),
                   preferred_element_type=jnp.float32)

    def _epilogue(y):
        y = y + b_ref[...]
        if activation == "gelu":
            # TODO(synk): tanh approximation; PyTorch nn.GELU default is erf.
            c = 0.7978845608028654  # sqrt(2/pi)
            y = 0.5 * y * (1.0 + jnp.tanh(c * (y + 0.044715 * y * y * y)))
        if residual:
            y = y + r_ref[...].astype(jnp.float32)
        o_ref[...] = y.astype(o_ref.dtype)

    if use_acc:
        kk = pl.program_id(2)

        @pl.when(kk == 0)
        def _init():
            acc_ref[...] = jnp.zeros_like(acc_ref)

        acc_ref[...] += part

        @pl.when(kk == nk - 1)
        def _fin():
            _epilogue(acc_ref[...])
    else:
        _epilogue(part)


def fused_matmul(x, w, b, *, ln=None, residual=None, activation=None,
                 eps=1e-5, tm=None, tn=None, tk=512, out_dtype=jnp.bfloat16):
    """y = act((LN(x)|x) @ w + b) [+ residual];  x: [M,K], w: [K,N], b: [N]."""
    M, K = x.shape
    K2, N = w.shape
    assert K == K2

    w_itemsize = jnp.dtype(w.dtype).itemsize
    if ln is not None:
        # LN needs the whole row -> tk = K, nk = 1.  Take the full N panel when
        # the weight panel fits comfortably so LN is computed once per row tile.
        tk = K
        tm = 256 if tm is None else tm
        if tn is None:
            tn = N if K * N * w_itemsize <= 8 * 1024 * 1024 else 512
    else:
        tm = 512 if tm is None else tm
        tn = 512 if tn is None else tn
        tk = _pick_ktile(K, tk, 128)
    tm = _pick_tile(M, tm, 16)   # 16-sublane alignment for packed bf16
    tn = _pick_tile(N, tn, 128)
    nk = K // tk
    use_acc = nk > 1
    grid = (pl.cdiv(M, tm), pl.cdiv(N, tn), nk)

    in_specs = [pl.BlockSpec((tm, tk), lambda i, j, k: (i, k))]
    args = [x]
    if ln is not None:
        g, bt = ln
        in_specs += [pl.BlockSpec((1, K), lambda i, j, k: (0, 0)),
                     pl.BlockSpec((1, K), lambda i, j, k: (0, 0))]
        args += [g.reshape(1, K).astype(jnp.float32),
                 bt.reshape(1, K).astype(jnp.float32)]
    in_specs += [pl.BlockSpec((tk, tn), lambda i, j, k: (k, j)),
                 pl.BlockSpec((1, tn), lambda i, j, k: (0, j))]
    args += [w, b.reshape(1, N).astype(jnp.float32)]
    if residual is not None:
        in_specs.append(pl.BlockSpec((tm, tn), lambda i, j, k: (i, j)))
        args.append(residual)

    x_itemsize = jnp.dtype(x.dtype).itemsize
    flops = 2 * M * N * K
    trans = M * N if activation == "gelu" else 0
    bytes_acc = (x_itemsize * M * K + w_itemsize * K * N
                 + jnp.dtype(out_dtype).itemsize * M * N + 4 * N
                 + (8 * K if ln is not None else 0)
                 + (jnp.dtype(residual.dtype).itemsize * M * N
                    if residual is not None else 0))

    return pl.pallas_call(
        functools.partial(_fused_matmul_kernel, ln=ln is not None,
                          residual=residual is not None,
                          activation=activation, eps=eps, nk=nk,
                          use_acc=use_acc),
        out_shape=jax.ShapeDtypeStruct((M, N), out_dtype),
        grid=grid,
        in_specs=in_specs,
        out_specs=pl.BlockSpec((tm, tn), lambda i, j, k: (i, j)),
        scratch_shapes=[pltpu.VMEM((tm, tn), jnp.float32)] if use_acc else [],
        compiler_params=pltpu.CompilerParams(
            dimension_semantics=("parallel", "parallel", "arbitrary"),
            vmem_limit_bytes=_VMEM_LIMIT),
        cost_estimate=pl.CostEstimate(flops=int(flops), transcendentals=int(trans),
                                      bytes_accessed=int(bytes_acc)),
    )(*args)


def _layernorm_kernel(x_ref, g_ref, b_ref, o_ref, *, eps):
    x = x_ref[...].astype(jnp.float32)
    mean = jnp.mean(x, axis=-1, keepdims=True)
    xc = x - mean
    var = jnp.mean(xc * xc, axis=-1, keepdims=True)
    o_ref[...] = (xc * jax.lax.rsqrt(var + eps) * g_ref[...]
                  + b_ref[...]).astype(o_ref.dtype)


def layernorm(x, gamma, beta, eps=1e-5, tm=512, out_dtype=jnp.float32):
    """Row-tiled LayerNorm over the last dim (matches nn.LayerNorm(D), eps=1e-5)."""
    M, D = x.shape
    tm = _pick_tile(M, tm, 16)
    bytes_acc = (jnp.dtype(x.dtype).itemsize * M * D
                 + jnp.dtype(out_dtype).itemsize * M * D + 8 * D)
    return pl.pallas_call(
        functools.partial(_layernorm_kernel, eps=eps),
        out_shape=jax.ShapeDtypeStruct((M, D), out_dtype),
        grid=(pl.cdiv(M, tm),),
        in_specs=[pl.BlockSpec((tm, D), lambda i: (i, 0)),
                  pl.BlockSpec((1, D), lambda i: (0, 0)),
                  pl.BlockSpec((1, D), lambda i: (0, 0))],
        out_specs=pl.BlockSpec((tm, D), lambda i: (i, 0)),
        compiler_params=pltpu.CompilerParams(
            dimension_semantics=("parallel",), vmem_limit_bytes=_VMEM_LIMIT),
        cost_estimate=pl.CostEstimate(flops=6 * M * D, transcendentals=M,
                                      bytes_accessed=int(bytes_acc)),
    )(x, gamma.reshape(1, D).astype(jnp.float32),
      beta.reshape(1, D).astype(jnp.float32))


def _attn_kernel(q_ref, kv_ref, o_ref, *, num_heads, scale, embed_dim):
    """All heads for one (batch, query-tile) per grid step, packed-qkv input."""
    D = embed_dim
    dh = D // num_heads
    q_slab = q_ref[...].astype(jnp.float32)     # (tq, 3D): only [:, :D] used
    kv_slab = kv_ref[...].astype(jnp.float32)   # (S, 3D)
    for h in range(num_heads):                  # static, small head count
        qh = q_slab[:, h * dh:(h + 1) * dh]
        kh = kv_slab[:, D + h * dh:D + (h + 1) * dh]
        vh = kv_slab[:, 2 * D + h * dh:2 * D + (h + 1) * dh]
        # q @ k^T via dot_general contracting on dh (no transpose materialized)
        s = jax.lax.dot_general(qh, kh, (((1,), (1,)), ((), ())),
                                preferred_element_type=jnp.float32) * scale
        s = s - jnp.max(s, axis=-1, keepdims=True)
        p = jnp.exp(s)
        p = p * pl.reciprocal(jnp.sum(p, axis=-1, keepdims=True))  # exact
        o_ref[:, h * dh:(h + 1) * dh] = jnp.dot(
            p, vh, preferred_element_type=jnp.float32).astype(o_ref.dtype)


def multihead_attention(qkv, *, num_heads, embed_dim, tq=256):
    """qkv: [B, S, 3D] packed (Q|K|V, head h at columns h*dh:(h+1)*dh) -> [B, S, D]."""
    B, S, threeD = qkv.shape
    D = embed_dim
    assert threeD == 3 * D
    dh = D // num_heads
    scale = float(dh) ** -0.5
    tq = _pick_tile(S, tq, 16)
    nq = pl.cdiv(S, tq)
    bytes_acc = (jnp.dtype(qkv.dtype).itemsize * B * S * threeD * 2
                 + 2 * B * S * D)
    return pl.pallas_call(
        functools.partial(_attn_kernel, num_heads=num_heads, scale=scale,
                          embed_dim=D),
        out_shape=jax.ShapeDtypeStruct((B, S, D), jnp.bfloat16),
        grid=(B, nq),
        in_specs=[pl.BlockSpec((None, tq, threeD), lambda b, qi: (b, qi, 0)),
                  pl.BlockSpec((None, S, threeD), lambda b, qi: (b, 0, 0))],
        out_specs=pl.BlockSpec((None, tq, D), lambda b, qi: (b, qi, 0)),
        compiler_params=pltpu.CompilerParams(
            dimension_semantics=("parallel", "parallel"),
            vmem_limit_bytes=_VMEM_LIMIT),
        cost_estimate=pl.CostEstimate(flops=4 * B * S * S * D,
                                      transcendentals=B * num_heads * S * S,
                                      bytes_accessed=int(bytes_acc)),
    )(qkv, qkv)


# --------------------------- parameter creation ----------------------------

def _xavier_uniform(key, shape):
    fan_in, fan_out = shape
    limit = (6.0 / (fan_in + fan_out)) ** 0.5
    return jax.random.uniform(key, shape, jnp.float32, -limit, limit)


def init_params(key, *, img_size, patch_size, in_chans, embed_dim, depth,
                num_heads, num_heads_in_last_block, mlp_ratio):
    num_patches = (img_size[0] // patch_size[0]) * (img_size[1] // patch_size[1])
    patch_dim = in_chans * patch_size[0] * patch_size[1]
    hidden = int(embed_dim * mlp_ratio)
    wdt = jnp.bfloat16  # bf16 weight storage, fp32 accumulation in kernels

    keys = iter(jax.random.split(key, 8 + 4 * depth))
    params = {
        # Conv2d(kernel=stride=patch) weight [D, C, ph, pw] flattened -> [C*ph*pw, D]
        "proj_w": _xavier_uniform(next(keys), (patch_dim, embed_dim)).astype(wdt),
        "proj_b": jnp.zeros((embed_dim,), jnp.float32),
        "cls_token": 0.02 * jax.random.normal(next(keys), (1, 1, embed_dim), jnp.float32),
        # spec uses torch.rand -> uniform[0,1)
        "pos_embed": jax.random.uniform(next(keys), (1, num_patches + 1, embed_dim),
                                        jnp.float32),
        "norm_g": jnp.ones((embed_dim,), jnp.float32),
        "norm_b": jnp.zeros((embed_dim,), jnp.float32),
        "blocks": [],
        "num_patches": num_patches,
    }

    heads_per_block = [num_heads] * (depth - 1) + [num_heads_in_last_block]
    for h in heads_per_block:
        blk = {
            "num_heads": h,
            "ln1_g": jnp.ones((embed_dim,), jnp.float32),
            "ln1_b": jnp.zeros((embed_dim,), jnp.float32),
            "qkv_w": _xavier_uniform(next(keys), (embed_dim, 3 * embed_dim)).astype(wdt),
            "qkv_b": jnp.zeros((3 * embed_dim,), jnp.float32),
            "proj_w": _xavier_uniform(next(keys), (embed_dim, embed_dim)).astype(wdt),
            "proj_b": jnp.zeros((embed_dim,), jnp.float32),
            "ln2_g": jnp.ones((embed_dim,), jnp.float32),
            "ln2_b": jnp.zeros((embed_dim,), jnp.float32),
            "fc1_w": _xavier_uniform(next(keys), (embed_dim, hidden)).astype(wdt),
            "fc1_b": jnp.zeros((hidden,), jnp.float32),
            "fc2_w": _xavier_uniform(next(keys), (hidden, embed_dim)).astype(wdt),
            "fc2_b": jnp.zeros((embed_dim,), jnp.float32),
        }
        params["blocks"].append(blk)
    return params


# ------------------------------ forward pass -------------------------------

def block_forward(x, p):
    """timm ViT Block: x + proj(attn(norm1(x))); x + mlp(norm2(x)) — LN/bias/GELU/
    residual fused into matmul epilogues; attention consumes packed qkv."""
    B, S, D = x.shape
    H = p["num_heads"]
    x2 = x.reshape(B * S, D)

    # LN1 fused into the QKV projection; output layout matches timm's
    # reshape(B,S,3,H,dh): Q|K|V contiguous, head h at columns h*dh:(h+1)*dh.
    qkv = fused_matmul(x2, p["qkv_w"], p["qkv_b"],
                       ln=(p["ln1_g"], p["ln1_b"])).reshape(B, S, 3 * D)

    # Packed qkv goes straight into attention (no HBM-materialized q/k/v slices).
    attn = multihead_attention(qkv, num_heads=H, embed_dim=D)   # [B, S, D]

    # output projection with the residual add fused into the epilogue
    x2 = fused_matmul(attn.reshape(B * S, D), p["proj_w"], p["proj_b"],
                      residual=x2)

    # LN2 fused into FC1 (+ GELU); residual fused into FC2 epilogue
    h = fused_matmul(x2, p["fc1_w"], p["fc1_b"],
                     ln=(p["ln2_g"], p["ln2_b"]), activation="gelu")
    x2 = fused_matmul(h, p["fc2_w"], p["fc2_b"], residual=x2)
    return x2.reshape(B, S, D)


def masked_vit_forward(params, x, mask_ratio, mask_key, patch_size):
    """x: [B, C, H, W] (NCHW).  Returns (tokens [B, 1+len_keep, D], mask, ids_restore)."""
    B, C, Himg, Wimg = x.shape
    ph, pw = patch_size
    gh, gw = Himg // ph, Wimg // pw
    L = gh * gw
    D = params["proj_w"].shape[1]

    # --- PatchEmbed: Conv2d(kernel=stride=patch) == per-patch linear projection ---
    patches = x.reshape(B, C, gh, ph, gw, pw).transpose(0, 2, 4, 1, 3, 5)
    patches = patches.reshape(B * L, C * ph * pw).astype(jnp.bfloat16)
    x = fused_matmul(patches, params["proj_w"], params["proj_b"]).reshape(B, L, D)

    # --- interpolate_pos_encoding: npatch == num_patches -> identity path ---
    pos_embed = params["pos_embed"]
    x = x.astype(jnp.float32) + pos_embed[:, 1:, :]

    # --- random_masking (glue: argsort of random noise + gather) ---
    if mask_ratio > 0.0:
        len_keep = int(L * (1 - mask_ratio))
        noise = jax.random.uniform(mask_key, (B, L), jnp.float32)
        ids_shuffle = jnp.argsort(noise, axis=1)
        ids_restore = jnp.argsort(ids_shuffle, axis=1)
        ids_keep = ids_shuffle[:, :len_keep]
        x = jnp.take_along_axis(x, ids_keep[:, :, None], axis=1)
        mask = jnp.ones((B, L), jnp.float32).at[:, :len_keep].set(0.0)
        mask = jnp.take_along_axis(mask, ids_restore, axis=1)
    else:
        mask, ids_restore = None, None

    # --- cls token + pos, concat ---
    cls_tok = params["cls_token"] + pos_embed[:, :1, :]
    cls_tok = jnp.broadcast_to(cls_tok, (B, 1, D))
    x = jnp.concatenate([cls_tok, x], axis=1)

    # --- transformer blocks (bf16 activations, fp32 accumulation in kernels) ---
    x = x.astype(jnp.bfloat16)
    for blk in params["blocks"]:
        x = block_forward(x, blk)

    # --- final LayerNorm (row-tiled Pallas kernel, fp32 output) ---
    Bn, S, _ = x.shape
    x = layernorm(x.reshape(Bn * S, D), params["norm_g"], params["norm_b"]).reshape(Bn, S, D)
    return x, mask, ids_restore


# ----------------------------------- main -----------------------------------

if __name__ == "__main__":
    key = jax.random.PRNGKey(0)
    k_param, k_x, k_mask = jax.random.split(key, 3)

    # Small config consistent with the module's constructor.
    img_size = (16, 16)
    patch_size = (4, 4)
    in_chans = 4
    embed_dim = 32
    depth = 2
    num_heads = 4
    num_heads_in_last_block = 2
    mlp_ratio = 4.0
    batch = 2
    mask_ratio = 0.5

    params = init_params(
        k_param,
        img_size=img_size, patch_size=patch_size, in_chans=in_chans,
        embed_dim=embed_dim, depth=depth, num_heads=num_heads,
        num_heads_in_last_block=num_heads_in_last_block, mlp_ratio=mlp_ratio)

    x = jax.random.normal(k_x, (batch, in_chans, img_size[0], img_size[1]), jnp.float32)

    out, mask, ids_restore = masked_vit_forward(params, x, mask_ratio, k_mask, patch_size)
    jax.block_until_ready(out)
    jax.block_until_ready(mask)
    jax.block_until_ready(ids_restore)

    L = params["num_patches"]
    len_keep = int(L * (1 - mask_ratio))
    assert out.shape == (batch, 1 + len_keep, embed_dim), out.shape
    assert mask.shape == (batch, L), mask.shape
    assert ids_restore.shape == (batch, L), ids_restore.shape
    assert bool(jnp.all(jnp.isfinite(out)))

    print("KERNEL_OK")
</pallas_src>

<mosaic_0001>
module attributes {stable_mosaic.version = 11 : i64} {
  func.func @_fused_matmul_kernel(%arg0: i32, %arg1: i32, %arg2: i32, %arg3: memref<32x64xbf16, #tpu.memory_space<vmem>>, %arg4: memref<64x32xbf16, #tpu.memory_space<vmem>>, %arg5: memref<1x32xf32, #tpu.memory_space<vmem>>, %arg6: memref<32x32xbf16, #tpu.memory_space<vmem>>) attributes {dimension_semantics = [#tpu.dimension_semantics<parallel>, #tpu.dimension_semantics<parallel>, #tpu.dimension_semantics<arbitrary>], iteration_bounds = array<i64: 1, 1, 1>, scalar_prefetch = 0 : i64, scratch_operands = 0 : i64, tpu.core_type = #tpu.core_type<tc>, window_params = [{transform_indices = @transform_0, window_bounds = array<i64: 32, 64>}, {transform_indices = @transform_1, window_bounds = array<i64: 64, 32>}, {transform_indices = @transform_2, window_bounds = array<i64: 1, 32>}, {transform_indices = @transform_3, window_bounds = array<i64: 32, 32>}]} {
    %c0 = arith.constant 0 : index
    %c0_0 = arith.constant 0 : index
    %0 = vector.load %arg3[%c0, %c0_0] : memref<32x64xbf16, #tpu.memory_space<vmem>>, vector<32x64xbf16>
    %1 = arith.extf %0 : vector<32x64xbf16> to vector<32x64xf32>
    %c0_1 = arith.constant 0 : index
    %c0_2 = arith.constant 0 : index
    %2 = vector.load %arg4[%c0_1, %c0_2] : memref<64x32xbf16, #tpu.memory_space<vmem>>, vector<64x32xbf16>
    %3 = arith.extf %2 : vector<64x32xbf16> to vector<64x32xf32>
    %cst = arith.constant dense<0.000000e+00> : vector<32x32xf32>
    %4 = tpu.matmul %1, %3, %cst {dimension_numbers = #tpu.dot_dimension_numbers<[1], [0], [0], [1], [0, 0, 1, 1], [], []>} : vector<32x64xf32>, vector<64x32xf32>, vector<32x32xf32> -> vector<32x32xf32>
    %c0_3 = arith.constant 0 : index
    %c0_4 = arith.constant 0 : index
    %5 = vector.load %arg5[%c0_3, %c0_4] : memref<1x32xf32, #tpu.memory_space<vmem>>, vector<1x32xf32>
    %6 = vector.broadcast %5 : vector<1x32xf32> to vector<32x32xf32>
    %7 = arith.addf %4, %6 : vector<32x32xf32>
    %8 = arith.truncf %7 : vector<32x32xf32> to vector<32x32xbf16>
    %c0_5 = arith.constant 0 : index
    %c0_6 = arith.constant 0 : index
    %9 = vector.load %arg6[%c0_5, %c0_6] : memref<32x32xbf16, #tpu.memory_space<vmem>>, vector<32x32xbf16>
    tpu.vector_store %arg6[%c0_5, %c0_6], %8 {strides = array<i32>} : memref<32x32xbf16, #tpu.memory_space<vmem>>, vector<32x32xbf16>,
    return
  }
  func.func @transform_0(%arg0: i32, %arg1: i32, %arg2: i32) -> (i32, i32) {
    %c0_i32 = arith.constant 0 : i32
    return %arg0, %arg2 : i32, i32
  }
  func.func @transform_1(%arg0: i32, %arg1: i32, %arg2: i32) -> (i32, i32) {
    %c0_i32 = arith.constant 0 : i32
    return %arg2, %arg1 : i32, i32
  }
  func.func @transform_2(%arg0: i32, %arg1: i32, %arg2: i32) -> (i32, i32) {
    %c0_i32 = arith.constant 0 : i32
    %c0_i32_0 = arith.constant 0 : i32
    return %c0_i32, %arg1 : i32, i32
  }
  func.func @transform_3(%arg0: i32, %arg1: i32, %arg2: i32) -> (i32, i32) {
    %c0_i32 = arith.constant 0 : i32
    return %arg0, %arg1 : i32, i32
  }
}

</mosaic_0001>

<llo_original>
// kernel: tpu_custom_call.1
$region0: #{tpu_custom_call.1}
  #allocation0 [shape = 'u32[]', space=smem, size = 0x4, offset = 0x4, fixed_abs, tag = 'smem constant byte address 0x4 - core index']
  #allocation1 [shape = 'u32[144,128]{1,0:T(1,128)}', space=vmem, size = 0x12000, scoped, tag = 'internal scratch']
  %s0 = inlined_call_operand.vmem [shape: bf16[32,64], index: 0, kind: input, shape index: {}]
  %s1 = inlined_call_operand.vmem [shape: bf16[64,32], index: 1, kind: input, shape index: {}]
  %s2 = inlined_call_operand.vmem [shape: f32[1,32], index: 2, kind: input, shape index: {}]
  %s3 = inlined_call_operand.hbm [shape: bf16[32,32], index: 3, kind: output, shape index: {}]
  %s4 = sld [smem:[#allocation0]]
  $region22: #{tpu_custom_call.1} parent=0
    _
  %s6 = ssub.s32 1, %s4
  %s7 = scalar_select 0, %s6, %s4
  $region1: #{tpu_custom_call.1} parent=0
    #allocation2 [shape = 'u8[8192]{0}', space=vmem, size = 0x2000, scoped, tag = 'output window, operand 0, single buffered']
    #allocation3 [shape = 's32[1]{0}', space=sflag, size = 0x4, scoped, tag = 'scoped memory for tpu_custom_call.1']
    %8 = vsyncpa [#allocation3], 0
    // Predicated region
    $region2: #{tpu_custom_call.1} parent=1 // pred_check
      _
    $region3: #{tpu_custom_call.1} parent=1 // pred_check_branch
      %10 = sbr.rel (0) target = $region5
    $region4: #{tpu_custom_call.1} parent=1 // pred_region
      _
    $region5: #{tpu_custom_call.1} parent=1 // pred_fallthru
      _
    // Predicated region
    $region6: #{tpu_custom_call.1} parent=1 // pred_check
      _
    $region7: #{tpu_custom_call.1} parent=1 // pred_check_branch
      %12 = sbr.rel (0) target = $region9
    $region8: #{tpu_custom_call.1} parent=1 // pred_region
      _
    $region9: #{tpu_custom_call.1} parent=1 // pred_fallthru
      _
    // Predicated region
    $region10: #{tpu_custom_call.1} parent=1 // pred_check
      _
    $region11: #{tpu_custom_call.1} parent=1 // pred_check_branch
      %14 = sbr.rel (0) target = $region13
    $region12: #{tpu_custom_call.1} parent=1 // pred_region
      _
    $region13: #{tpu_custom_call.1} parent=1 // pred_fallthru
      _
    %v15 = vld [vmem:[%s0] sm:$0xf]
    %v16 = vld [vmem:[%s0 + $0x4] sm:$0xf]
    %v17 = vld [vmem:[%s0 + $0x8] sm:$0xf]
    %v18 = vld [vmem:[%s0 + $0xc] sm:$0xf]
    %v19 = vunpack.c.l.bf16 %v15
    %v20 = vunpack.c.l.bf16 %v16
    %v21 = vunpack.c.l.bf16 %v17
    %v22 = vunpack.c.l.bf16 %v18
    %v23 = vld [vmem:[%s1] sm:$0xf]
    %v24 = vld [vmem:[%s1 + $0x4] sm:$0xf]
    %v25 = vld [vmem:[%s1 + $0x8] sm:$0xf]
    %v26 = vld [vmem:[%s1 + $0xc] sm:$0xf]
    %v27 = vld [vmem:[%s1 + $0x10] sm:$0xf]
    %v28 = vld [vmem:[%s1 + $0x14] sm:$0xf]
    %v29 = vld [vmem:[%s1 + $0x18] sm:$0xf]
    %v30 = vld [vmem:[%s1 + $0x1c] sm:$0xf]
    %v31 = vunpack.c.l.bf16 %v23
    %v32 = vunpack.c.l.bf16 %v24
    %v33 = vunpack.c.l.bf16 %v25
    %v34 = vunpack.c.l.bf16 %v26
    %v35 = vunpack.c.l.bf16 %v27
    %v36 = vunpack.c.l.bf16 %v28
    %v37 = vunpack.c.l.bf16 %v29
    %v38 = vunpack.c.l.bf16 %v30
    %v39 = vld [vmem:[%s2] sm:$0x1]
    %v41 = vlaneseq
    %v42 = vshrl.u32 %v41, 7
    %v43 = vsub.s32 0, %v42
    %v44 = vrot.slane %v39, %v43
    %vm46 = vcmask 523264
    %v48 = vsel %vm46, %v19, 0
    %v51 = vsel %vm46, %v20, 0
    %v54 = vsel %vm46, %v21, 0
    %v57 = vsel %vm46, %v22, 0
    %59 = vmatprep.subr.mxu0 0.0
    %60 = vmatpush1.msra.mxu0 0.0
    %61 = vmatprep.subr.mxu0 0.0
    %62 = vmatpush1.msra.mxu0 0.0
    %63 = vmatprep.subr.mxu0 0.0
    %64 = vmatpush1.msra.mxu0 0.0
    %65 = vmatprep.subr.mxu0 0.0
    %66 = vmatpush1.msra.mxu0 0.0
    %67 = vmatprep.subr.mxu0 0.0
    %68 = vmatpush1.msra.mxu0 0.0
    %69 = vmatprep.subr.mxu0 0.0
    %70 = vmatpush1.msra.mxu0 0.0
    %71 = vmatprep.subr.mxu0 0.0
    %72 = vmatpush1.msra.mxu0 0.0
    %73 = vmatprep.subr.mxu0 0.0
    %74 = vmatpush1.msra.mxu0 0.0
    %75 = vmatprep.subr.mxu0 0.0
    %76 = vmatpush1.msra.mxu0 %v38
    %77 = vmatprep.subr.mxu0 0.0
    %78 = vmatpush1.msra.mxu0 %v37
    %79 = vmatprep.subr.mxu0 0.0
    %80 = vmatpush1.msra.mxu0 %v36
    %81 = vmatprep.subr.mxu0 0.0
    %82 = vmatpush1.msra.mxu0 %v35
    %83 = vmatprep.subr.mxu0 0.0
    %84 = vmatpush1.msra.mxu0 %v34
    %85 = vmatprep.subr.mxu0 0.0
    %86 = vmatpush1.msra.mxu0 %v33
    %87 = vmatprep.subr.mxu0 0.0
    %88 = vmatpush1.msra.mxu0 %v32
    %89 = vmatprep.subr.mxu0 0.0
    %90 = vmatpush1.msra.mxu0 %v31
    %91 = vmatprep.subr.mxu0 0.0
    %92 = vmatpush2.msra.mxu0 0.0
    %93 = vmatprep.subr.mxu0 0.0
    %94 = vmatpush2.msra.mxu0 0.0
    %95 = vmatprep.subr.mxu0 0.0
    %96 = vmatpush2.msra.mxu0 0.0
    %97 = vmatprep.subr.mxu0 0.0
    %98 = vmatpush2.msra.mxu0 0.0
    %99 = vmatprep.subr.mxu0 0.0
    %100 = vmatpush2.msra.mxu0 0.0
    %101 = vmatprep.subr.mxu0 0.0
    %102 = vmatpush2.msra.mxu0 0.0
    %103 = vmatprep.subr.mxu0 0.0
    %104 = vmatpush2.msra.mxu0 0.0
    %105 = vmatprep.subr.mxu0 0.0
    %106 = vmatpush2.msra.mxu0 0.0
    %107 = vmatprep.subr.mxu0 0.0
    %108 = vmatpush2.msra.mxu0 0.0
    %109 = vmatprep.subr.mxu0 0.0
    %110 = vmatpush2.msra.mxu0 0.0
    %111 = vmatprep.subr.mxu0 0.0
    %112 = vmatpush2.msra.mxu0 0.0
    %113 = vmatprep.subr.mxu0 0.0
    %114 = vmatpush2.msra.mxu0 0.0
    %115 = vmatprep.subr.mxu0 0.0
    %116 = vmatpush2.msra.mxu0 0.0
    %117 = vmatprep.subr.mxu0 0.0
    %118 = vmatpush2.msra.mxu0 0.0
    %119 = vmatprep.subr.mxu0 0.0
    %120 = vmatpush2.msra.mxu0 0.0
    %121 = vmatprep.subr.mxu0 0.0
    %122 = vmatpush2.msra.mxu0 0.0
    %123 = vmatprep.mubr.f32.mxu0 0.0
    %124 = vmatmul.mubr.f32.gmra.mxu0 %v48
    %v125 = vpop.f32.mrf.mxu0
    %v126 = vadd.f32 %v44, %v125
    %v127 = vpop.f32.mrf.mxu0
    %128 = vmatprep.mubr.f32.mxu0 0.0
    %129 = vmatmul.mubr.f32.gmra.mxu0 %v51
    %v130 = vpop.f32.mrf.mxu0
    %v131 = vadd.f32 %v44, %v130
    %v132 = vpop.f32.mrf.mxu0
    %133 = vmatprep.mubr.f32.mxu0 0.0
    %134 = vmatmul.mubr.f32.gmra.mxu0 %v54
    %v135 = vpop.f32.mrf.mxu0
    %v136 = vadd.f32 %v44, %v135
    %v137 = vpop.f32.mrf.mxu0
    %138 = vmatprep.mubr.f32.mxu0 0.0
    %139 = vmatmul.mubr.f32.gmra.mxu0 %v57
    %v140 = vpop.f32.mrf.mxu0
    %v141 = vadd.f32 %v44, %v140
    %v142 = vpop.f32.mrf.mxu0
    %143 = vdwg.mxu0
    %v144 = vpack.c.bf16 %v131, %v126
    %v145 = vpack.c.bf16 %v141, %v136
    %v148 = vunpack.c.l.b16 %v144
    %v149 = vunpack.c.h.b16 %v144
    %v150 = vunpack.c.l.b16 %v145
    %v151 = vunpack.c.h.b16 %v145
    %v152 = vpack.c.b16 %v148, %v148
    %v153 = vpack.c.b16 %v149, %v149
    %v154 = vpack.c.b16 %v150, %v150
    %v155 = vpack.c.b16 %v151, %v151
    %vm160 = vcmask 257024
    %161 = vst.msk [vmem:[#allocation2] sm:$0xf] %vm160, %v152
    %162 = vst.msk [vmem:[#allocation2 + $0x4] sm:$0xf] %vm160, %v153
    %163 = vst.msk [vmem:[#allocation2 + $0x8] sm:$0xf] %vm160, %v154
    %164 = vst.msk [vmem:[#allocation2 + $0xc] sm:$0xf] %vm160, %v155
    // Predicated region
    $region14: #{tpu_custom_call.1} parent=1 // pred_check
      _
    $region15: #{tpu_custom_call.1} parent=1 // pred_check_branch
      %166 = sbr.rel (0) target = $region17
    $region16: #{tpu_custom_call.1} parent=1 // pred_region
      %s168 = ssub.s32 256, 256
      %169 = vsyncadd [#allocation3], %s168
      %s170 = sshll.u32 [#allocation2], 4
      %s171 = int_to_ptr.vmem [resolvable:$true] %s170
      %176 = dma.vmem_to_hbm [thread:$0]  %s171, 256, %s3, [#allocation3], 64, 64, 4
    $region17: #{tpu_custom_call.1} parent=1 // pred_fallthru
      _
    // Predicated region
    $region18: #{tpu_custom_call.1} parent=1 // pred_check
      _
    $region19: #{tpu_custom_call.1} parent=1 // pred_check_branch
      %178 = sbr.rel (0) target = $region21
    $region20: #{tpu_custom_call.1} parent=1 // pred_region
      %179 = dma.done [#allocation3], 256
    $region21: #{tpu_custom_call.1} parent=1 // pred_fallthru
      _
    %180 = vsyncpa [#allocation3], 1

</llo_original>
